<compile_context>
chip_gen: v6e
topology: v6e:2x2x1
jax: 0.10.0
libtpu: 0.0.40
codegen_flags: <defaults>
</compile_context>

<pallas_src>
from functools import partial

import jax
import jax.numpy as jnp
from jax.experimental import pallas as pl
from jax.experimental.pallas import tpu as pltpu


def _round_up(x, m):
    return ((x + m - 1) // m) * m


def _choose_vocab_tile(hidden, max_vocab):
    """Vocab tile width TV (lanes).

    Multiple of 128 (256 when heads are large, matching the v6e/v7x 2x256^2
    MXU), sized so the bf16 weight double-buffer (~2*H*TV*2B) stays around
    16 MiB -- comfortably inside v7x's 64 MiB physical VMEM and cheap to raise
    above v5e's 16 MiB default scoped limit.
    """
    need = _round_up(max(max_vocab, 128), 128)
    if need <= 256:
        return need                              # tiny heads: one narrow tile
    tv = (8 * 1024 * 1024) // (2 * hidden)       # ~8 MiB per bf16 weight buffer
    tv = max(256, (tv // 256) * 256)
    return min(tv, _round_up(need, 256))


def _logits_lse_kernel(col_tbl_ref, num_tiles_ref, x_ref, w_ref, b_ref,
                       logits_ref, lse_ref, m_ref, l_ref):
    # col_tbl_ref:   (A, T_max) int32 SMEM  (prefetch; used only by index_maps)
    # num_tiles_ref: (A,)       int32 SMEM  (prefetch)
    # x_ref:      (1, B_pad, H)   bf16 -- resident across the vocab axis
    # w_ref:      (H, TV)         bf16 -- one vocab tile of this head's weights
    # b_ref:      (1, TV)         f32  -- bias, padded lanes pre-poisoned
    # logits_ref: (B_pad, TV)     f32  -- raw logits for this vocab tile
    # lse_ref:    (1, B_pad, 128) f32  -- per-head log-sum-exp (lane broadcast)
    # m_ref/l_ref:(B_pad, 1)      f32  -- online-LSE running max / running sum
    a = pl.program_id(0)
    t = pl.program_id(1)
    nt = num_tiles_ref[a]

    @pl.when(t == 0)
    def _init():
        m_ref[...] = jnp.full(m_ref.shape, -jnp.inf, jnp.float32)
        l_ref[...] = jnp.zeros(l_ref.shape, jnp.float32)

    @pl.when(t < nt)  # clamped past-the-end tiles: no compute, no re-DMA
    def _tile():
        logits = jnp.dot(x_ref[0], w_ref[...],
                         preferred_element_type=jnp.float32) + b_ref[...]
        logits_ref[...] = logits                    # raw logits; pass 2 finalizes
        m_prev = m_ref[...]
        m_new = jnp.maximum(m_prev, jnp.max(logits, axis=-1, keepdims=True))
        l_ref[...] = (l_ref[...] * jnp.exp(m_prev - m_new)
                      + jnp.sum(jnp.exp(logits - m_new), axis=-1, keepdims=True))
        m_ref[...] = m_new

    @pl.when(t == pl.num_programs(1) - 1)
    def _emit_lse():
        lse = m_ref[...] + jnp.log(l_ref[...])      # (B_pad, 1)
        lse_ref[0] = jnp.broadcast_to(lse, lse_ref.shape[1:])


def _finalize_kernel(col_tbl_ref, num_tiles_ref, logits_ref, lse_ref, out_ref):
    # Cheap pass: log_softmax = raw_logits - (m + log l).  No matmul here.
    t = pl.program_id(1)

    @pl.when(t < num_tiles_ref[pl.program_id(0)])
    def _():
        lse = lse_ref[0][:, 0:1]                    # (B_pad, 1)
        out_ref[...] = logits_ref[...] - lse


@partial(jax.jit, static_argnames=("tv", "t_max"))
def _classification_heads(x, w_slab, b_slab, col_block, num_tiles, *, tv, t_max):
    """x: (B, S, H) f32; w_slab: (H, V_total) bf16 (concatenated per-head
    columns); b_slab: (1, V_total) f32 (padded lanes poisoned with finfo.min);
    col_block: (A, T_max) int32 column-tile table; num_tiles: (A,) int32.
    Returns (B_pad, V_total) f32 log-probabilities."""
    B, S, H = x.shape
    A = col_block.shape[0]
    assert S >= A, "sequence length must provide one token per attribute head"
    V_total = w_slab.shape[1]
    B_pad = _round_up(max(B, 8), 8)

    # Token i feeds attribute head i.  Pre-cast to bf16 (halves activation DMA,
    # MXU-native) and pad batch to 8 sublanes for full-vreg tiles.
    x_t = jnp.transpose(x[:, :A, :], (1, 0, 2)).astype(jnp.bfloat16)  # (A, B, H)
    if B_pad != B:
        x_t = jnp.pad(x_t, ((0, 0), (0, B_pad - B), (0, 0)))

    def col_map(a, t, cb, nt):          # weight / bias / logits tiles
        return 0, cb[a, t]

    def head_map(a, t, cb, nt):         # activation / lse tiles (vocab-resident)
        return a, 0, 0

    # Explicit VMEM budget (double-buffered tiles) -- makes the limit uniform
    # across the differing per-generation default scoped limits.
    vmem_bytes = (2 * H * tv * 2            # weight double-buffer (bf16)
                  + 2 * tv * 4              # bias double-buffer
                  + 2 * B_pad * tv * 4      # raw-logits output double-buffer
                  + 2 * B_pad * 128 * 4     # lse output
                  + 2 * B_pad * H * 2       # activation tile
                  + 2 * B_pad * 128 * 4)    # m/l scratch (padded)
    vmem_limit = int(min(max(2 * vmem_bytes, 32 << 20), 56 << 20))

    cost1 = pl.CostEstimate(
        flops=2 * B_pad * H * V_total,
        transcendentals=2 * B_pad * V_total,
        bytes_accessed=(H * V_total * 2 + V_total * 4 + A * B_pad * H * 2
                        + B_pad * V_total * 4 + A * B_pad * 128 * 4),
    )

    logits_raw, lse = pl.pallas_call(
        _logits_lse_kernel,
        out_shape=(jax.ShapeDtypeStruct((B_pad, V_total), jnp.float32),
                   jax.ShapeDtypeStruct((A, B_pad, 128), jnp.float32)),
        grid_spec=pltpu.PrefetchScalarGridSpec(
            num_scalar_prefetch=2,
            grid=(A, t_max),
            in_specs=[
                pl.BlockSpec((1, B_pad, H), head_map),   # x: resident per head
                pl.BlockSpec((H, tv), col_map),          # weight vocab tile
                pl.BlockSpec((1, tv), col_map),          # bias vocab tile
            ],
            out_specs=[
                pl.BlockSpec((B_pad, tv), col_map),      # raw logits tile
                pl.BlockSpec((1, B_pad, 128), head_map), # per-head lse
            ],
            scratch_shapes=[pltpu.VMEM((B_pad, 1), jnp.float32),   # running max
                            pltpu.VMEM((B_pad, 1), jnp.float32)],  # running sum
        ),
        compiler_params=pltpu.CompilerParams(
            dimension_semantics=("parallel", "arbitrary"),
            vmem_limit_bytes=vmem_limit),
        cost_estimate=cost1,
    )(col_block, num_tiles, x_t, w_slab, b_slab)

    cost2 = pl.CostEstimate(
        flops=B_pad * V_total,
        transcendentals=0,
        bytes_accessed=2 * B_pad * V_total * 4 + A * B_pad * 128 * 4,
    )

    log_probs = pl.pallas_call(
        _finalize_kernel,
        out_shape=jax.ShapeDtypeStruct((B_pad, V_total), jnp.float32),
        grid_spec=pltpu.PrefetchScalarGridSpec(
            num_scalar_prefetch=2,
            grid=(A, t_max),
            in_specs=[
                pl.BlockSpec((B_pad, tv), col_map),
                pl.BlockSpec((1, B_pad, 128), head_map),
            ],
            out_specs=pl.BlockSpec((B_pad, tv), col_map),
        ),
        compiler_params=pltpu.CompilerParams(
            dimension_semantics=("parallel", "arbitrary"),
            vmem_limit_bytes=32 << 20),
        cost_estimate=cost2,
    )(col_block, num_tiles, logits_raw, lse)

    return log_probs


class ClassificationHeadPallas:
    """JAX/Pallas port of classificationHead (all heads fused, vocab-tiled)."""

    def __init__(self, hidden, vocab_sizes, key):
        self.hidden = hidden
        self.vocab_sizes = dict(vocab_sizes)
        self.col_names = list(self.vocab_sizes.keys())
        sizes = [self.vocab_sizes[c] for c in self.col_names]
        self.tv = _choose_vocab_tile(hidden, max(sizes))

        # Concatenated per-head packing: each head's columns are padded only to
        # a multiple of TV, so weight HBM traffic is sum_i ceil(V_i/TV)*TV.
        widths = [_round_up(s, self.tv) for s in sizes]
        self.num_tiles = [w // self.tv for w in widths]
        self.tile_start, off = [], 0
        for w in widths:
            self.tile_start.append(off // self.tv)
            off += w
        self.v_total = off
        self.col_start = [t * self.tv for t in self.tile_start]
        self.t_max = max(self.num_tiles)

        # Column-tile lookup table: short heads clamp to their last real tile
        # so the kernel's BlockSpec index repeats (no re-DMA) on padded steps.
        col_block = [[ts + min(t, nt - 1) for t in range(self.t_max)]
                     for ts, nt in zip(self.tile_start, self.num_tiles)]

        neg = float(jnp.finfo(jnp.float32).min)
        w_slab = jnp.zeros((hidden, self.v_total), jnp.float32)
        # Mask baked into the bias: padded weight columns are zero, so padded
        # logits equal the (poisoned) bias -- no iota/where mask in the kernel.
        b_slab = jnp.full((1, self.v_total), neg, jnp.float32)

        self.params = {}  # per-attribute f32 (W:(H,V), b:(1,V)) reference copy
        for name, size, c0 in zip(self.col_names, sizes, self.col_start):
            key, kw, kb = jax.random.split(key, 3)
            bound = 1.0 / (hidden ** 0.5)  # roughly nn.Linear's uniform scale
            w = jax.random.uniform(kw, (hidden, size), jnp.float32,
                                   minval=-bound, maxval=bound)
            b = jax.random.uniform(kb, (1, size), jnp.float32,
                                   minval=-bound, maxval=bound)
            self.params[name] = (w, b)
            w_slab = w_slab.at[:, c0:c0 + size].set(w)
            b_slab = b_slab.at[:, c0:c0 + size].set(b)

        self.w_slab = w_slab.astype(jnp.bfloat16)   # bf16 weight streaming
        self.b_slab = b_slab                        # bias + softmax math stay f32
        self.col_block_arr = jnp.asarray(col_block, jnp.int32)
        self.num_tiles_arr = jnp.asarray(self.num_tiles, jnp.int32)

    def __call__(self, x):
        # x: (B, seq, hidden); token i feeds attribute head i.
        B = x.shape[0]
        out = _classification_heads(
            x, self.w_slab, self.b_slab, self.col_block_arr,
            self.num_tiles_arr, tv=self.tv, t_max=self.t_max)
        # Single device->host transfer; per-sample dicing is numpy glue,
        # mirroring the PyTorch forward's list-of-dicts packaging.
        out_host = jax.device_get(out)              # (B_pad, V_total)
        list_of_outputs = []
        for i in range(B):
            single_output = {}
            for name, c0 in zip(self.col_names, self.col_start):
                size = self.vocab_sizes[name]
                single_output[name] = out_host[i:i + 1, c0:c0 + size]
            list_of_outputs.append(single_output)
        return list_of_outputs


if __name__ == "__main__":
    key = jax.random.PRNGKey(0)
    B, S, H = 2, 8, 32
    vocab_sizes = {"attr_a": 16, "attr_b": 24, "attr_c": 8}

    key, kx, kp = jax.random.split(key, 3)
    x = jax.random.normal(kx, (B, S, H), jnp.float32)

    head = ClassificationHeadPallas(H, vocab_sizes, kp)
    outputs = head(x)
    jax.block_until_ready(outputs)

    # Shape check against the module contract.
    for sample in outputs:
        for col_name, arr in sample.items():
            assert arr.shape == (1, vocab_sizes[col_name])

    # Correctness vs plain-JAX reference (bf16 weights/activations on the MXU,
    # f32 accumulation + f32 log-softmax -- same precision path as the kernel).
    for idx, col_name in enumerate(head.col_names):
        w, b = head.params[col_name]
        x_tok = x[:, idx].astype(jnp.bfloat16)
        logits = jnp.dot(x_tok, w.astype(jnp.bfloat16),
                         preferred_element_type=jnp.float32) + b
        ref = jax.nn.log_softmax(logits, axis=-1)
        got = jnp.concatenate(
            [jnp.asarray(s[col_name]) for s in outputs], axis=0)
        assert jnp.allclose(ref, got, atol=1e-4, rtol=1e-4), (
            f"mismatch vs reference for {col_name}")

    print("KERNEL_OK")
</pallas_src>

<mosaic_0001>
module attributes {stable_mosaic.version = 11 : i64} {
  func.func @_logits_lse_kernel(%arg0: i32, %arg1: i32, %arg2: memref<3x1xi32, #tpu.memory_space<smem>>, %arg3: memref<3xi32, #tpu.memory_space<smem>>, %arg4: memref<1x8x32xbf16, #tpu.memory_space<vmem>>, %arg5: memref<32x128xbf16, #tpu.memory_space<vmem>>, %arg6: memref<1x128xf32, #tpu.memory_space<vmem>>, %arg7: memref<8x128xf32, #tpu.memory_space<vmem>>, %arg8: memref<1x8x128xf32, #tpu.memory_space<vmem>>, %arg9: memref<8x1xf32, #tpu.memory_space<vmem>>, %arg10: memref<8x1xf32, #tpu.memory_space<vmem>>) attributes {dimension_semantics = [#tpu.dimension_semantics<parallel>, #tpu.dimension_semantics<arbitrary>], iteration_bounds = array<i64: 3, 1>, scalar_prefetch = 2 : i64, scratch_operands = 2 : i64, tpu.core_type = #tpu.core_type<tc>, window_params = [{transform_indices = @transform_0, window_bounds = array<i64: 1, 8, 32>}, {transform_indices = @transform_1, window_bounds = array<i64: 32, 128>}, {transform_indices = @transform_2, window_bounds = array<i64: 1, 128>}, {transform_indices = @transform_3, window_bounds = array<i64: 8, 128>}, {transform_indices = @transform_4, window_bounds = array<i64: 1, 8, 128>}]} {
    %0 = arith.index_cast %arg0 : i32 to index
    %1 = memref.load %arg3[%0] : memref<3xi32, #tpu.memory_space<smem>>
    %c0_i32 = arith.constant 0 : i32
    %2 = arith.cmpi eq, %arg1, %c0_i32 : i32
    %3 = arith.extui %2 : i1 to i32
    %c0_i32_0 = arith.constant 0 : i32
    %4 = arith.cmpi ne, %3, %c0_i32_0 : i32
    scf.if %4 {
      %cst = arith.constant 0xFF800000 : f32
      %11 = vector.broadcast %cst : f32 to vector<8x1xf32>
      %c0 = arith.constant 0 : index
      %c0_4 = arith.constant 0 : index
      %12 = vector.load %arg9[%c0, %c0_4] : memref<8x1xf32, #tpu.memory_space<vmem>>, vector<8x1xf32>
      tpu.vector_store %arg9[%c0, %c0_4], %11 {strides = array<i32>} : memref<8x1xf32, #tpu.memory_space<vmem>>, vector<8x1xf32>,
      %cst_5 = arith.constant 0.000000e+00 : f32
      %13 = vector.broadcast %cst_5 : f32 to vector<8x1xf32>
      %c0_6 = arith.constant 0 : index
      %c0_7 = arith.constant 0 : index
      %14 = vector.load %arg10[%c0_6, %c0_7] : memref<8x1xf32, #tpu.memory_space<vmem>>, vector<8x1xf32>
      tpu.vector_store %arg10[%c0_6, %c0_7], %13 {strides = array<i32>} : memref<8x1xf32, #tpu.memory_space<vmem>>, vector<8x1xf32>,
    } else {
    }
    %5 = arith.cmpi slt, %arg1, %1 : i32
    %6 = arith.extui %5 : i1 to i32
    %c0_i32_1 = arith.constant 0 : i32
    %7 = arith.cmpi ne, %6, %c0_i32_1 : i32
    scf.if %7 {
      %c0 = arith.constant 0 : index
      %c0_4 = arith.constant 0 : index
      %c0_5 = arith.constant 0 : index
      %11 = vector.load %arg4[%c0, %c0_4, %c0_5] : memref<1x8x32xbf16, #tpu.memory_space<vmem>>, vector<1x8x32xbf16>
      %12 = vector.shape_cast %11 : vector<1x8x32xbf16> to vector<8x32xbf16>
      %c0_6 = arith.constant 0 : index
      %c0_7 = arith.constant 0 : index
      %13 = vector.load %arg5[%c0_6, %c0_7] : memref<32x128xbf16, #tpu.memory_space<vmem>>, vector<32x128xbf16>
      %cst = arith.constant dense<0.000000e+00> : vector<8x128xf32>
      %14 = tpu.matmul %12, %13, %cst {dimension_numbers = #tpu.dot_dimension_numbers<[1], [0], [0], [1], [0, 0, 1, 1], [], []>} : vector<8x32xbf16>, vector<32x128xbf16>, vector<8x128xf32> -> vector<8x128xf32>
      %c0_8 = arith.constant 0 : index
      %c0_9 = arith.constant 0 : index
      %15 = vector.load %arg6[%c0_8, %c0_9] : memref<1x128xf32, #tpu.memory_space<vmem>>, vector<1x128xf32>
      %16 = vector.broadcast %15 : vector<1x128xf32> to vector<8x128xf32>
      %17 = arith.addf %14, %16 : vector<8x128xf32>
      %c0_10 = arith.constant 0 : index
      %c0_11 = arith.constant 0 : index
      %18 = vector.load %arg7[%c0_10, %c0_11] : memref<8x128xf32, #tpu.memory_space<vmem>>, vector<8x128xf32>
      tpu.vector_store %arg7[%c0_10, %c0_11], %17 {strides = array<i32>} : memref<8x128xf32, #tpu.memory_space<vmem>>, vector<8x128xf32>,
      %c0_12 = arith.constant 0 : index
      %c0_13 = arith.constant 0 : index
      %19 = vector.load %arg9[%c0_12, %c0_13] : memref<8x1xf32, #tpu.memory_space<vmem>>, vector<8x1xf32>
      %cst_14 = arith.constant dense<0xFF800000> : vector<8xf32>
      %20 = vector.multi_reduction <maximumf>, %17, %cst_14 [1] : vector<8x128xf32> to vector<8xf32>
      %21 = vector.shape_cast %20 : vector<8xf32> to vector<8x1xf32>
      %22 = arith.maximumf %19, %21 : vector<8x1xf32>
      %c0_15 = arith.constant 0 : index
      %c0_16 = arith.constant 0 : index
      %23 = vector.load %arg10[%c0_15, %c0_16] : memref<8x1xf32, #tpu.memory_space<vmem>>, vector<8x1xf32>
      %24 = arith.subf %19, %22 : vector<8x1xf32>
      %25 = math.exp %24 : vector<8x1xf32>
      %26 = arith.mulf %23, %25 : vector<8x1xf32>
      %27 = vector.broadcast %22 : vector<8x1xf32> to vector<8x128xf32>
      %28 = arith.subf %17, %27 : vector<8x128xf32>
      %29 = math.exp %28 : vector<8x128xf32>
      %cst_17 = arith.constant dense<0.000000e+00> : vector<8xf32>
      %30 = vector.multi_reduction <add>, %29, %cst_17 [1] : vector<8x128xf32> to vector<8xf32>
      %31 = vector.shape_cast %30 : vector<8xf32> to vector<8x1xf32>
      %32 = arith.addf %26, %31 : vector<8x1xf32>
      %c0_18 = arith.constant 0 : index
      %c0_19 = arith.constant 0 : index
      %33 = vector.load %arg10[%c0_18, %c0_19] : memref<8x1xf32, #tpu.memory_space<vmem>>, vector<8x1xf32>
      tpu.vector_store %arg10[%c0_18, %c0_19], %32 {strides = array<i32>} : memref<8x1xf32, #tpu.memory_space<vmem>>, vector<8x1xf32>,
      %c0_20 = arith.constant 0 : index
      %c0_21 = arith.constant 0 : index
      %34 = vector.load %arg9[%c0_20, %c0_21] : memref<8x1xf32, #tpu.memory_space<vmem>>, vector<8x1xf32>
      tpu.vector_store %arg9[%c0_20, %c0_21], %22 {strides = array<i32>} : memref<8x1xf32, #tpu.memory_space<vmem>>, vector<8x1xf32>,
    } else {
    }
    %c0_i32_2 = arith.constant 0 : i32
    %8 = arith.cmpi eq, %arg1, %c0_i32_2 : i32
    %9 = arith.extui %8 : i1 to i32
    %c0_i32_3 = arith.constant 0 : i32
    %10 = arith.cmpi ne, %9, %c0_i32_3 : i32
    scf.if %10 {
      %c0 = arith.constant 0 : index
      %c0_4 = arith.constant 0 : index
      %11 = vector.load %arg9[%c0, %c0_4] : memref<8x1xf32, #tpu.memory_space<vmem>>, vector<8x1xf32>
      %c0_5 = arith.constant 0 : index
      %c0_6 = arith.constant 0 : index
      %12 = vector.load %arg10[%c0_5, %c0_6] : memref<8x1xf32, #tpu.memory_space<vmem>>, vector<8x1xf32>
      %13 = math.log %12 : vector<8x1xf32>
      %14 = arith.addf %11, %13 : vector<8x1xf32>
      %15 = vector.shape_cast %14 : vector<8x1xf32> to vector<8x1xf32>
      %16 = vector.broadcast %15 : vector<8x1xf32> to vector<8x128xf32>
      %c0_7 = arith.constant 0 : index
      %c0_8 = arith.constant 0 : index
      %c0_9 = arith.constant 0 : index
      %17 = vector.load %arg8[%c0_7, %c0_8, %c0_9] : memref<1x8x128xf32, #tpu.memory_space<vmem>>, vector<1x8x128xf32>
      %18 = vector.shape_cast %17 : vector<1x8x128xf32> to vector<8x128xf32>
      %19 = vector.shape_cast %16 : vector<8x128xf32> to vector<1x8x128xf32>
      tpu.vector_store %arg8[%c0_7, %c0_8, %c0_9], %19 {strides = array<i32>} : memref<1x8x128xf32, #tpu.memory_space<vmem>>, vector<1x8x128xf32>,
    } else {
    }
    return
  }
  func.func @transform_0(%arg0: i32, %arg1: i32, %arg2: memref<3x1xi32, #tpu.memory_space<smem>>, %arg3: memref<3xi32, #tpu.memory_space<smem>>) -> (i32, i32, i32) {
    %c0_i32 = arith.constant 0 : i32
    %c0_i32_0 = arith.constant 0 : i32
    %c0_i32_1 = arith.constant 0 : i32
    return %arg0, %c0_i32, %c0_i32_0 : i32, i32, i32
  }
  func.func @transform_1(%arg0: i32, %arg1: i32, %arg2: memref<3x1xi32, #tpu.memory_space<smem>>, %arg3: memref<3xi32, #tpu.memory_space<smem>>) -> (i32, i32) {
    %0 = arith.index_cast %arg0 : i32 to index
    %1 = arith.index_cast %arg1 : i32 to index
    %2 = memref.load %arg2[%0, %1] : memref<3x1xi32, #tpu.memory_space<smem>>
    %c0_i32 = arith.constant 0 : i32
    %c0_i32_0 = arith.constant 0 : i32
    return %c0_i32, %2 : i32, i32
  }
  func.func @transform_2(%arg0: i32, %arg1: i32, %arg2: memref<3x1xi32, #tpu.memory_space<smem>>, %arg3: memref<3xi32, #tpu.memory_space<smem>>) -> (i32, i32) {
    %0 = arith.index_cast %arg0 : i32 to index
    %1 = arith.index_cast %arg1 : i32 to index
    %2 = memref.load %arg2[%0, %1] : memref<3x1xi32, #tpu.memory_space<smem>>
    %c0_i32 = arith.constant 0 : i32
    %c0_i32_0 = arith.constant 0 : i32
    return %c0_i32, %2 : i32, i32
  }
  func.func @transform_3(%arg0: i32, %arg1: i32, %arg2: memref<3x1xi32, #tpu.memory_space<smem>>, %arg3: memref<3xi32, #tpu.memory_space<smem>>) -> (i32, i32) {
    %0 = arith.index_cast %arg0 : i32 to index
    %1 = arith.index_cast %arg1 : i32 to index
    %2 = memref.load %arg2[%0, %1] : memref<3x1xi32, #tpu.memory_space<smem>>
    %c0_i32 = arith.constant 0 : i32
    %c0_i32_0 = arith.constant 0 : i32
    return %c0_i32, %2 : i32, i32
  }
  func.func @transform_4(%arg0: i32, %arg1: i32, %arg2: memref<3x1xi32, #tpu.memory_space<smem>>, %arg3: memref<3xi32, #tpu.memory_space<smem>>) -> (i32, i32, i32) {
    %c0_i32 = arith.constant 0 : i32
    %c0_i32_0 = arith.constant 0 : i32
    %c0_i32_1 = arith.constant 0 : i32
    return %arg0, %c0_i32, %c0_i32_0 : i32, i32, i32
  }
}

module attributes {stable_mosaic.version = 11 : i64} {
  func.func @_finalize_kernel(%arg0: i32, %arg1: i32, %arg2: memref<3x1xi32, #tpu.memory_space<smem>>, %arg3: memref<3xi32, #tpu.memory_space<smem>>, %arg4: memref<8x128xf32, #tpu.memory_space<vmem>>, %arg5: memref<1x8x128xf32, #tpu.memory_space<vmem>>, %arg6: memref<8x128xf32, #tpu.memory_space<vmem>>) attributes {dimension_semantics = [#tpu.dimension_semantics<parallel>, #tpu.dimension_semantics<arbitrary>], iteration_bounds = array<i64: 3, 1>, scalar_prefetch = 2 : i64, scratch_operands = 0 : i64, tpu.core_type = #tpu.core_type<tc>, window_params = [{transform_indices = @transform_0, window_bounds = array<i64: 8, 128>}, {transform_indices = @transform_1, window_bounds = array<i64: 1, 8, 128>}, {transform_indices = @transform_2, window_bounds = array<i64: 8, 128>}]} {
    %0 = arith.index_cast %arg0 : i32 to index
    %1 = memref.load %arg3[%0] : memref<3xi32, #tpu.memory_space<smem>>
    %2 = arith.cmpi slt, %arg1, %1 : i32
    %3 = arith.extui %2 : i1 to i32
    %c0_i32 = arith.constant 0 : i32
    %4 = arith.cmpi ne, %3, %c0_i32 : i32
    scf.if %4 {
      %c0 = arith.constant 0 : index
      %c0_0 = arith.constant 0 : index
      %c0_1 = arith.constant 0 : index
      %5 = vector.load %arg5[%c0, %c0_0, %c0_1] : memref<1x8x128xf32, #tpu.memory_space<vmem>>, vector<1x8x128xf32>
      %6 = vector.shape_cast %5 : vector<1x8x128xf32> to vector<8x128xf32>
      %7 = vector.extract_strided_slice %6 {offsets = [0, 0], sizes = [8, 1], strides = [1, 1]} : vector<8x128xf32> to vector<8x1xf32>
      %c0_2 = arith.constant 0 : index
      %c0_3 = arith.constant 0 : index
      %8 = vector.load %arg4[%c0_2, %c0_3] : memref<8x128xf32, #tpu.memory_space<vmem>>, vector<8x128xf32>
      %9 = vector.broadcast %7 : vector<8x1xf32> to vector<8x128xf32>
      %10 = arith.subf %8, %9 : vector<8x128xf32>
      %c0_4 = arith.constant 0 : index
      %c0_5 = arith.constant 0 : index
      %11 = vector.load %arg6[%c0_4, %c0_5] : memref<8x128xf32, #tpu.memory_space<vmem>>, vector<8x128xf32>
      tpu.vector_store %arg6[%c0_4, %c0_5], %10 {strides = array<i32>} : memref<8x128xf32, #tpu.memory_space<vmem>>, vector<8x128xf32>,
    } else {
    }
    return
  }
  func.func @transform_0(%arg0: i32, %arg1: i32, %arg2: memref<3x1xi32, #tpu.memory_space<smem>>, %arg3: memref<3xi32, #tpu.memory_space<smem>>) -> (i32, i32) {
    %0 = arith.index_cast %arg0 : i32 to index
    %1 = arith.index_cast %arg1 : i32 to index
    %2 = memref.load %arg2[%0, %1] : memref<3x1xi32, #tpu.memory_space<smem>>
    %c0_i32 = arith.constant 0 : i32
    %c0_i32_0 = arith.constant 0 : i32
    return %c0_i32, %2 : i32, i32
  }
  func.func @transform_1(%arg0: i32, %arg1: i32, %arg2: memref<3x1xi32, #tpu.memory_space<smem>>, %arg3: memref<3xi32, #tpu.memory_space<smem>>) -> (i32, i32, i32) {
    %c0_i32 = arith.constant 0 : i32
    %c0_i32_0 = arith.constant 0 : i32
    %c0_i32_1 = arith.constant 0 : i32
    return %arg0, %c0_i32, %c0_i32_0 : i32, i32, i32
  }
  func.func @transform_2(%arg0: i32, %arg1: i32, %arg2: memref<3x1xi32, #tpu.memory_space<smem>>, %arg3: memref<3xi32, #tpu.memory_space<smem>>) -> (i32, i32) {
    %0 = arith.index_cast %arg0 : i32 to index
    %1 = arith.index_cast %arg1 : i32 to index
    %2 = memref.load %arg2[%0, %1] : memref<3x1xi32, #tpu.memory_space<smem>>
    %c0_i32 = arith.constant 0 : i32
    %c0_i32_0 = arith.constant 0 : i32
    return %c0_i32, %2 : i32, i32
  }
}

</mosaic_0001>

<llo_original>
// kernel: _classification_heads.3
$region0: #{_classification_heads.3}
  #allocation0 [shape = 'u32[]', space=smem, size = 0x4, offset = 0x4, fixed_abs, tag = 'smem constant byte address 0x4 - core index']
  #allocation1 [shape = 'u32[144,128]{1,0:T(1,128)}', space=vmem, size = 0x12000, scoped, tag = 'internal scratch']
  #allocation2 [shape = 's32[1]{0}', space=sflag, size = 0x4, scoped, tag = 'scoped memory for _classification_heads.3']
  #allocation3 [shape = 'u8[2048]{0}', space=smem, size = 0x800, scoped, tag = 'prefetched SMEM operand 0']
  #allocation4 [shape = 'u8[512]{0}', space=smem, size = 0x200, scoped, tag = 'prefetched SMEM operand 1']
  %s0 = inlined_call_operand.vmem [shape: s32[3,1], index: 0, kind: input, shape index: {}]
  %s1 = inlined_call_operand.vmem [shape: s32[3], index: 1, kind: input, shape index: {}]
  %s2 = inlined_call_operand.vmem [shape: f32[8,384], index: 2, kind: input, shape index: {}]
  %s3 = inlined_call_operand.vmem [shape: f32[3,8,128], index: 3, kind: input, shape index: {}]
  %s4 = inlined_call_operand.hbm [shape: f32[8,384], index: 4, kind: output, shape index: {}]
  %s5 = sld [smem:[#allocation0]]
  $region45: #{_classification_heads.3} parent=0
    _
  %s7 = ssub.s32 1, %s5
  %s8 = scalar_select 0, %s7, %s5
  %s9 = sshll.u32 %s0, 4
  %s10 = int_to_ptr.vmem [resolvable:$true] %s9
  %12 = dma.vmem_to_smem %s10, 64, [#allocation3], [#allocation2]
  %s13 = sshll.u32 %s1, 4
  %s14 = int_to_ptr.vmem [resolvable:$true] %s13
  %16 = dma.vmem_to_smem %s14, 16, [#allocation4], [#allocation2]
  %17 = dma.done [#allocation2], 80
  %18 = sfence
  $region1: #{_classification_heads.3} parent=0
    #allocation5 [shape = 'u8[8192]{0}', space=vmem, size = 0x2000, scoped, tag = 'output window, operand 0']
    #allocation6 [shape = 's32[2]{0}', space=sflag, size = 0x8, scoped, tag = 'scoped memory for _classification_heads.3']
    %19 = vsyncpa [#allocation6], 0
    %s20 = scalar_lea.sflag [#allocation6], 1
    %21 = vsyncpa %s20, 0
    loop: start=0, step=1, limit=5
    $region2: #{_classification_heads.3} parent=1 // loop_pre_header
      _
    $region3: #{_classification_heads.3} parent=1 // loop_header
      %s23 = sphi 0, %s27
      %p24 = scmp.ge.s32.totalorder %s23, 5
      %s30 = sphi 0, %s42
      %s31 = sphi 0, %s38
      %s32 = sphi 0, %s30
      %s33 = sphi 0, %s31
      %s34 = sphi 0, %s32
      %s35 = sphi 0, %s33
      %s61 = sphi 0, %s63
      %s64 = sphi 0, %s61
      %s65 = sphi 0, %s64
      %s81 = sphi 0, %s65
      %s87 = sphi 0, %s89
      %s90 = sphi 0, %s87
      %s91 = sphi 0, %s90
      %s107 = sphi 0, %s91
      %s129 = sphi 0, %s131
      %s132 = sphi 0, %s129
      %s133 = sphi 0, %s132
      %s149 = sphi 0, %s133
    $region4: #{_classification_heads.3} parent=1 // loop_header_branch
      %26 = sbr.rel (%p24) target = $region8
    $region5: #{_classification_heads.3} parent=1 // loop_body
      %s28 = ssub.s32 %s23, 1
      %s29 = ssub.s32 %s23, 2
      %s36 = sadd.s32 1, %s31
      %p37 = scmp.ge.s32.totalorder %s36, 1
      %s38 = scalar_select %p37, 0, %s36
      %s39 = sadd.s32 1, %s30
      %s40 = scalar_select %p37, %s39, %s30
      %p41 = scmp.ge.s32.totalorder %s40, 3
      %s42 = scalar_select %p41, 0, %s40
      %s43 = sshra.s32 %s31, 7
      %s44 = sand.u32 %s31, 127
      %s45 = sadd.s32 %s43, %s30
      %s46 = smul.u32 %s45, 128
      %s47 = sshra.s32 %s31, 7
      %s48 = sand.u32 %s31, 127
      %s49 = sadd.s32 %s46, %s48
      %s50 = sld [smem:[#allocation3 + %s49]]
      %s51 = sshra.s32 %s38, 7
      %s52 = sand.u32 %s38, 127
      %s53 = sadd.s32 %s51, %s42
      %s54 = smul.u32 %s53, 128
      %s55 = sshra.s32 %s38, 7
      %s56 = sand.u32 %s38, 127
      %s57 = sadd.s32 %s54, %s56
      %s58 = sld [smem:[#allocation3 + %s57]]
      %s59 = ssub.s32 %s50, %s58
      %p60 = scmp.eq.s32.totalorder %s59, 0
      %s62 = sadd.s32 %s61, 1
      %s63 = scalar_select %p60, %s61, %s62
      %p66 = pneg %p60
      %p67 = scmp.eq.s32.totalorder %s23, 2
      %p68 = por %p66, %p67
      %p69 = scmp.ne.s32.totalorder %s61, %s64
      %p70 = scmp.eq.s32.totalorder %s23, 0
      %p71 = por %p69, %p70
      %p72 = scmp.ne.s32.totalorder %s61, %s64
      %p73 = scmp.eq.s32.totalorder %s28, 2
      %p74 = por %p72, %p73
      %p75 = scmp.ne.s32.totalorder %s64, %s65
      %p76 = scmp.eq.s32.totalorder %s28, 0
      %p77 = por %p75, %p76
      %p78 = scmp.ne.s32.totalorder %s64, %s65
      %p79 = scmp.eq.s32.totalorder %s29, 2
      %p80 = por %p78, %p79
      %p82 = scmp.ne.s32.totalorder %s65, %s81
      %p83 = scmp.eq.s32.totalorder %s29, 0
      %p84 = por %p82, %p83
      %s85 = ssub.s32 %s30, %s42
      %p86 = scmp.eq.s32.totalorder %s85, 0
      %s88 = sadd.s32 %s87, 1
      %s89 = scalar_select %p86, %s87, %s88
      %p92 = pneg %p86
      %p93 = scmp.eq.s32.totalorder %s23, 2
      %p94 = por %p92, %p93
      %p95 = scmp.ne.s32.totalorder %s87, %s90
      %p96 = scmp.eq.s32.totalorder %s23, 0
      %p97 = por %p95, %p96
      %p98 = scmp.ne.s32.totalorder %s87, %s90
      %p99 = scmp.eq.s32.totalorder %s28, 2
      %p100 = por %p98, %p99
      %p101 = scmp.ne.s32.totalorder %s90, %s91
      %p102 = scmp.eq.s32.totalorder %s28, 0
      %p103 = por %p101, %p102
      %p104 = scmp.ne.s32.totalorder %s90, %s91
      %p105 = scmp.eq.s32.totalorder %s29, 2
      %p106 = por %p104, %p105
      %p108 = scmp.ne.s32.totalorder %s91, %s107
      %p109 = scmp.eq.s32.totalorder %s29, 0
      %p110 = por %p108, %p109
      %s111 = sshra.s32 %s31, 7
      %s112 = sand.u32 %s31, 127
      %s113 = sadd.s32 %s111, %s30
      %s114 = smul.u32 %s113, 128
      %s115 = sshra.s32 %s31, 7
      %s116 = sand.u32 %s31, 127
      %s117 = sadd.s32 %s114, %s116
      %s118 = sld [smem:[#allocation3 + %s117]]
      %s119 = sshra.s32 %s38, 7
      %s120 = sand.u32 %s38, 127
      %s121 = sadd.s32 %s119, %s42
      %s122 = smul.u32 %s121, 128
      %s123 = sshra.s32 %s38, 7
      %s124 = sand.u32 %s38, 127
      %s125 = sadd.s32 %s122, %s124
      %s126 = sld [smem:[#allocation3 + %s125]]
      %s127 = ssub.s32 %s118, %s126
      %p128 = scmp.eq.s32.totalorder %s127, 0
      %s130 = sadd.s32 %s129, 1
      %s131 = scalar_select %p128, %s129, %s130
      %p134 = pneg %p128
      %p135 = scmp.eq.s32.totalorder %s23, 2
      %p136 = por %p134, %p135
      %p137 = scmp.ne.s32.totalorder %s129, %s132
      %p138 = scmp.eq.s32.totalorder %s23, 0
      %p139 = por %p137, %p138
      %p140 = scmp.ne.s32.totalorder %s129, %s132
      %p141 = scmp.eq.s32.totalorder %s28, 2
      %p142 = por %p140, %p141
      %p143 = scmp.ne.s32.totalorder %s132, %s133
      %p144 = scmp.eq.s32.totalorder %s28, 0
      %p145 = por %p143, %p144
      %p146 = scmp.ne.s32.totalorder %s132, %s133
      %p147 = scmp.eq.s32.totalorder %s29, 2
      %p148 = por %p146, %p147
      %p150 = scmp.ne.s32.totalorder %s133, %s149
      %p151 = scmp.eq.s32.totalorder %s29, 0
      %p152 = por %p150, %p151
      %p153 = scmp.le.s32.totalorder 1, %s23
      %p154 = scmp.lt.s32.totalorder %s23, 4
      %p155 = pnand %p153, %p154
      %p156 = pneg %p155
      // Predicated region
      $region9: #{_classification_heads.3} parent=5 // pred_check
        _
      $region10: #{_classification_heads.3} parent=5 // pred_check_branch
        %158 = sbr.rel (%p155) target = $region12
      $region11: #{_classification_heads.3} parent=5 // pred_region
        %s159 = ssub.s32 %s23, 1
      $region12: #{_classification_heads.3} parent=5 // pred_fallthru
        _
      %p160 = scmp.lt.s32.totalorder %s23, 3
      // Predicated region
      $region13: #{_classification_heads.3} parent=5 // pred_check
        %p161 = pneg %p160
      $region14: #{_classification_heads.3} parent=5 // pred_check_branch
        %163 = sbr.rel (%p161) target = $region16
      $region15: #{_classification_heads.3} parent=5 // pred_region
        // Predicated region
        $region17: #{_classification_heads.3} parent=15 // pred_check
          %p164 = pneg %p71
        $region18: #{_classification_heads.3} parent=15 // pred_check_branch
          %166 = sbr.rel (%p164) target = $region20
        $region19: #{_classification_heads.3} parent=15 // pred_region
          %s167 = sshra.s32 %s31, 7
          %s168 = sand.u32 %s31, 127
          %s169 = sadd.s32 %s167, %s30
          %s170 = smul.u32 %s169, 128
          %s171 = sshra.s32 %s31, 7
          %s172 = sand.u32 %s31, 127
          %s173 = sadd.s32 %s170, %s172
          %s174 = sld [smem:[#allocation3 + %s173]]
          %p175 = scmp.lt.s32.totalorder %s174, 2
          %s176 = scalar_select %p175, %s174, 2
          %s177 = smul.addr %s176, 8
          %s178 = scalar_lea.vmem %s2, %s177
          %s179 = sshra.s32 %s31, 7
          %s180 = sand.u32 %s31, 127
          %s181 = sadd.s32 %s179, %s30
          %s182 = smul.u32 %s181, 128
          %s183 = sshra.s32 %s31, 7
          %s184 = sand.u32 %s31, 127
          %s185 = sadd.s32 %s182, %s184
          %s186 = sld [smem:[#allocation3 + %s185]]
        $region20: #{_classification_heads.3} parent=15 // pred_fallthru
          _
        // Predicated region
        $region21: #{_classification_heads.3} parent=15 // pred_check
          %p187 = pneg %p97
        $region22: #{_classification_heads.3} parent=15 // pred_check_branch
          %189 = sbr.rel (%p187) target = $region24
        $region23: #{_classification_heads.3} parent=15 // pred_region
          %p190 = scmp.lt.s32.totalorder %s30, 2
          %s191 = scalar_select %p190, %s30, 2
          %s192 = smul.addr %s191, 8
          %s193 = scalar_lea.vmem %s3, %s192
        $region24: #{_classification_heads.3} parent=15 // pred_fallthru
          _
      $region16: #{_classification_heads.3} parent=5 // pred_fallthru
        _
      %p194 = scmp.le.s32.totalorder 1, %s23
      %p195 = scmp.lt.s32.totalorder %s23, 4
      %p196 = pnand %p194, %p195
      %p197 = pneg %p196
      // Predicated region
      $region25: #{_classification_heads.3} parent=5 // pred_check
        _
      $region26: #{_classification_heads.3} parent=5 // pred_check_branch
        %199 = sbr.rel (%p196) target = $region28
      $region27: #{_classification_heads.3} parent=5 // pred_region
        %s200 = ssub.s32 %s23, 1
        %s201 = sshra.s32 %s33, 7
        %s202 = sand.u32 %s33, 127
        %s203 = sadd.s32 %s201, %s32
        %s204 = smul.u32 %s203, 128
        %s205 = sshra.s32 %s33, 7
        %s206 = sand.u32 %s33, 127
        %s207 = sadd.s32 %s204, %s206
        %s208 = sld [smem:[#allocation3 + %s207]]
        %p209 = scmp.lt.s32.totalorder %s208, 2
        %s210 = scalar_select %p209, %s208, 2
        %s211 = smul.addr %s210, 8
        %s212 = scalar_lea.vmem %s2, %s211
        %p213 = pneg %p77
        %p214 = pneg %p74
        %p215 = scmp.lt.s32.totalorder %s32, 2
        %s216 = scalar_select %p215, %s32, 2
        %s217 = smul.addr %s216, 8
        %s218 = scalar_lea.vmem %s3, %s217
        %p219 = pneg %p103
        %p220 = pneg %p100
        %p221 = pneg %p145
        %p222 = pneg %p142
        %s223 = sand.u32 %s132, 1
        %s224 = scalar_lea.sflag [#allocation6], %s223
        %s225 = sand.u32 %s132, 1
        %s226 = smul.addr %s225, 8
        %s227 = scalar_lea.vmem [#allocation5], %s226
        %s228 = sshra.s32 %s33, 7
        %s229 = sand.u32 %s33, 127
        %s230 = sadd.s32 %s228, %s32
        %s231 = smul.u32 %s230, 128
        %s232 = sshra.s32 %s33, 7
        %s233 = sand.u32 %s33, 127
        %s234 = sadd.s32 %s231, %s233
        %s235 = sld [smem:[#allocation3 + %s234]]
        %p236 = scmp.lt.s32.totalorder %s235, 2
        %s237 = scalar_select %p236, %s235, 2
        %s238 = smul.addr %s237, 8
        %s239 = scalar_lea.vmem %s2, %s238
        %s240 = sshra.s32 %s33, 7
        %s241 = sand.u32 %s33, 127
        %s242 = sadd.s32 %s240, %s32
        %s243 = smul.u32 %s242, 128
        %s244 = sshra.s32 %s33, 7
        %s245 = sand.u32 %s33, 127
        %s246 = sadd.s32 %s243, %s245
        %s247 = sld [smem:[#allocation3 + %s246]]
        %p248 = scmp.lt.s32.totalorder %s32, 2
        %s249 = scalar_select %p248, %s32, 2
        %s250 = smul.addr %s249, 8
        %s251 = scalar_lea.vmem %s3, %s250
        %s252 = sshra.s32 %s33, 7
        %s253 = sand.u32 %s33, 127
        %s254 = sadd.s32 %s252, %s32
        %s255 = smul.u32 %s254, 128
        %s256 = sshra.s32 %s33, 7
        %s257 = sand.u32 %s33, 127
        %s258 = sadd.s32 %s255, %s257
        %s259 = sld [smem:[#allocation3 + %s258]]
        %s260 = sld [smem:[#allocation4 + %s32]]
        %p261 = scmp.lt.s32.totalorder %s33, %s260
        // Predicated region
        $region29: #{_classification_heads.3} parent=27 // pred_check
          %p262 = pneg %p261
        $region30: #{_classification_heads.3} parent=27 // pred_check_branch
          %264 = sbr.rel (%p262) target = $region32
        $region31: #{_classification_heads.3} parent=27 // pred_region
          %v265 = vld [vmem:[%s251] sm:$0xff]
          %v266 = vld [vmem:[%s239] sm:$0xff]
          %268 = vset.pattern.permute.xlu0 0
          %269 = vperm.xlu0 %268, %v265
          %v270 = vpop.permute.xlu0 %269
          %v272 = vsub.f32 %v266, %v270
          %273 = vst [vmem:[%s227] sm:$0xff] %v272
        $region32: #{_classification_heads.3} parent=27 // pred_fallthru
          _
        %s274 = sand.u32 %s132, 1
        %s275 = scalar_lea.sflag [#allocation6], %s274
        %s276 = sand.u32 %s132, 1
        %s277 = smul.addr %s276, 8
        %s278 = scalar_lea.vmem [#allocation5], %s277
        // Predicated region
        $region33: #{_classification_heads.3} parent=27 // pred_check
          %p279 = pneg %p142
        $region34: #{_classification_heads.3} parent=27 // pred_check_branch
          %281 = sbr.rel (%p279) target = $region36
        $region35: #{_classification_heads.3} parent=27 // pred_region
          %s282 = sshra.s32 %s33, 7
          %s283 = sand.u32 %s33, 127
          %s284 = sadd.s32 %s282, %s32
          %s285 = smul.u32 %s284, 128
          %s286 = sshra.s32 %s33, 7
          %s287 = sand.u32 %s33, 127
          %s288 = sadd.s32 %s285, %s287
          %s289 = sld [smem:[#allocation3 + %s288]]
          %s291 = ssub.s32 128, 128
          %292 = vsyncadd %s275, %s291
          %s293 = smul.addr %s289, 128
          %s294 = scalar_lea.hbm %s4, %s293
          %s296 = sshll.u32 %s278, 4
          %s297 = int_to_ptr.vmem [resolvable:$true] %s296
          %299 = dma.vmem_to_hbm [thread:$0]  %s297, 128, %s294, %s275
        $region36: #{_classification_heads.3} parent=27 // pred_fallthru
          _
      $region28: #{_classification_heads.3} parent=5 // pred_fallthru
        _
      %p300 = scmp.le.s32.totalorder 2, %s23
      // Predicated region
      $region37: #{_classification_heads.3} parent=5 // pred_check
        %p301 = pneg %p300
      $region38: #{_classification_heads.3} parent=5 // pred_check_branch
        %303 = sbr.rel (%p301) target = $region40
      $region39: #{_classification_heads.3} parent=5 // pred_region
        %s304 = ssub.s32 %s23, 2
        // Predicated region
        $region41: #{_classification_heads.3} parent=39 // pred_check
          %p305 = pneg %p148
        $region42: #{_classification_heads.3} parent=39 // pred_check_branch
          %307 = sbr.rel (%p305) target = $region44
        $region43: #{_classification_heads.3} parent=39 // pred_region
          %s308 = sand.u32 %s133, 1
          %s309 = scalar_lea.sflag [#allocation6], %s308
          %s310 = sand.u32 %s133, 1
          %s311 = smul.addr %s310, 8
          %s312 = scalar_lea.vmem [#allocation5], %s311
          %313 = dma.done %s309, 128
        $region44: #{_classification_heads.3} parent=39 // pred_fallthru
          _
      $region40: #{_classification_heads.3} parent=5 // pred_fallthru
        _
    $region6: #{_classification_heads.3} parent=1 // loop_footer
      %s27 = sadd.s32 1, %s23
    $region7: #{_classification_heads.3} parent=1 // loop_footer_branch
      %22 = sbr.rel target = $region3
    $region8: #{_classification_heads.3} parent=1 // loop_exit
      _
    %314 = vsyncpa [#allocation6], 1
    %s315 = scalar_lea.sflag [#allocation6], 1
    %316 = vsyncpa %s315, 1

// kernel: _classification_heads.2
$region0: #{_classification_heads.2}
  #allocation0 [shape = 'u32[]', space=smem, size = 0x4, offset = 0x4, fixed_abs, tag = 'smem constant byte address 0x4 - core index']
  #allocation1 [shape = 'u32[144,128]{1,0:T(1,128)}', space=vmem, size = 0x12000, scoped, tag = 'internal scratch']
  #allocation2 [shape = 'f32[8,1]{1,0:T(8,128)}', space=vmem, size = 0x1000, scoped, tag = 'scratch operand']
  #allocation3 [shape = 'f32[8,1]{1,0:T(8,128)}', space=vmem, size = 0x1000, scoped, tag = 'scratch operand']
  #allocation4 [shape = 's32[1]{0}', space=sflag, size = 0x4, scoped, tag = 'scoped memory for _classification_heads.2']
  #allocation5 [shape = 'u8[2048]{0}', space=smem, size = 0x800, scoped, tag = 'prefetched SMEM operand 0']
  #allocation6 [shape = 'u8[512]{0}', space=smem, size = 0x200, scoped, tag = 'prefetched SMEM operand 1']
  %s0 = inlined_call_operand.vmem [shape: s32[3,1], index: 0, kind: input, shape index: {}]
  %s1 = inlined_call_operand.vmem [shape: s32[3], index: 1, kind: input, shape index: {}]
  %s2 = inlined_call_operand.vmem [shape: bf16[3,8,32], index: 2, kind: input, shape index: {}]
  %s3 = inlined_call_operand.hbm [shape: bf16[32,384], index: 3, kind: input, shape index: {}]
  %s4 = inlined_call_operand.vmem [shape: f32[1,384], index: 4, kind: input, shape index: {}]
  %s5 = inlined_call_operand.vmem [shape: f32[8,384], index: 5, kind: output, shape index: {0}]
  %s6 = inlined_call_operand.vmem [shape: f32[3,8,128], index: 6, kind: output, shape index: {1}]
  %7 = xla_tuple %s5, %s6
  %s8 = sld [smem:[#allocation0]]
  $region69: #{_classification_heads.2} parent=0
    _
  %s10 = ssub.s32 1, %s8
  %s11 = scalar_select 0, %s10, %s8
  %s12 = sshll.u32 %s0, 4
  %s13 = int_to_ptr.vmem [resolvable:$true] %s12
  %15 = dma.vmem_to_smem %s13, 64, [#allocation5], [#allocation4]
  %s16 = sshll.u32 %s1, 4
  %s17 = int_to_ptr.vmem [resolvable:$true] %s16
  %19 = dma.vmem_to_smem %s17, 16, [#allocation6], [#allocation4]
  %20 = dma.done [#allocation4], 80
  %21 = sfence
  $region1: #{_classification_heads.2} parent=0
    #allocation7 [shape = 'u8[16384]{0}', space=vmem, size = 0x4000, scoped, tag = 'input window, operand 3']
    #allocation8 [shape = 's32[2]{0}', space=sflag, size = 0x8, scoped, tag = 'scoped memory for _classification_heads.2']
    %22 = vsyncpa [#allocation8], 0
    %s23 = scalar_lea.sflag [#allocation8], 1
    %24 = vsyncpa %s23, 0
    loop: start=0, step=1, limit=5
    $region2: #{_classification_heads.2} parent=1 // loop_pre_header
      _
    $region3: #{_classification_heads.2} parent=1 // loop_header
      %s26 = sphi 0, %s30
      %p27 = scmp.ge.s32.totalorder %s26, 5
      %s33 = sphi 0, %s45
      %s34 = sphi 0, %s41
      %s35 = sphi 0, %s33
      %s36 = sphi 0, %s34
      %s37 = sphi 0, %s35
      %s38 = sphi 0, %s36
      %s48 = sphi 0, %s50
      %s51 = sphi 0, %s48
      %s52 = sphi 0, %s51
      %s68 = sphi 0, %s52
      %s90 = sphi 0, %s92
      %s93 = sphi 0, %s90
      %s94 = sphi 0, %s93
      %s110 = sphi 0, %s94
      %s132 = sphi 0, %s134
      %s135 = sphi 0, %s132
      %s136 = sphi 0, %s135
      %s152 = sphi 0, %s136
      %s174 = sphi 0, %s176
      %s177 = sphi 0, %s174
      %s178 = sphi 0, %s177
      %s194 = sphi 0, %s178
      %s200 = sphi 0, %s202
      %s203 = sphi 0, %s200
      %s204 = sphi 0, %s203
      %s220 = sphi 0, %s204
    $region4: #{_classification_heads.2} parent=1 // loop_header_branch
      %29 = sbr.rel (%p27) target = $region8
    $region5: #{_classification_heads.2} parent=1 // loop_body
      %s31 = ssub.s32 %s26, 1
      %s32 = ssub.s32 %s26, 2
      %s39 = sadd.s32 1, %s34
      %p40 = scmp.ge.s32.totalorder %s39, 1
      %s41 = scalar_select %p40, 0, %s39
      %s42 = sadd.s32 1, %s33
      %s43 = scalar_select %p40, %s42, %s33
      %p44 = scmp.ge.s32.totalorder %s43, 3
      %s45 = scalar_select %p44, 0, %s43
      %s46 = ssub.s32 %s33, %s45
      %p47 = scmp.eq.s32.totalorder %s46, 0
      %s49 = sadd.s32 %s48, 1
      %s50 = scalar_select %p47, %s48, %s49
      %p53 = pneg %p47
      %p54 = scmp.eq.s32.totalorder %s26, 2
      %p55 = por %p53, %p54
      %p56 = scmp.ne.s32.totalorder %s48, %s51
      %p57 = scmp.eq.s32.totalorder %s26, 0
      %p58 = por %p56, %p57
      %p59 = scmp.ne.s32.totalorder %s48, %s51
      %p60 = scmp.eq.s32.totalorder %s31, 2
      %p61 = por %p59, %p60
      %p62 = scmp.ne.s32.totalorder %s51, %s52
      %p63 = scmp.eq.s32.totalorder %s31, 0
      %p64 = por %p62, %p63
      %p65 = scmp.ne.s32.totalorder %s51, %s52
      %p66 = scmp.eq.s32.totalorder %s32, 2
      %p67 = por %p65, %p66
      %p69 = scmp.ne.s32.totalorder %s52, %s68
      %p70 = scmp.eq.s32.totalorder %s32, 0
      %p71 = por %p69, %p70
      %s72 = sshra.s32 %s34, 7
      %s73 = sand.u32 %s34, 127
      %s74 = sadd.s32 %s72, %s33
      %s75 = smul.u32 %s74, 128
      %s76 = sshra.s32 %s34, 7
      %s77 = sand.u32 %s34, 127
      %s78 = sadd.s32 %s75, %s77
      %s79 = sld [smem:[#allocation5 + %s78]]
      %s80 = sshra.s32 %s41, 7
      %s81 = sand.u32 %s41, 127
      %s82 = sadd.s32 %s80, %s45
      %s83 = smul.u32 %s82, 128
      %s84 = sshra.s32 %s41, 7
      %s85 = sand.u32 %s41, 127
      %s86 = sadd.s32 %s83, %s85
      %s87 = sld [smem:[#allocation5 + %s86]]
      %s88 = ssub.s32 %s79, %s87
      %p89 = scmp.eq.s32.totalorder %s88, 0
      %s91 = sadd.s32 %s90, 1
      %s92 = scalar_select %p89, %s90, %s91
      %p95 = pneg %p89
      %p96 = scmp.eq.s32.totalorder %s26, 2
      %p97 = por %p95, %p96
      %p98 = scmp.ne.s32.totalorder %s90, %s93
      %p99 = scmp.eq.s32.totalorder %s26, 0
      %p100 = por %p98, %p99
      %p101 = scmp.ne.s32.totalorder %s90, %s93
      %p102 = scmp.eq.s32.totalorder %s31, 2
      %p103 = por %p101, %p102
      %p104 = scmp.ne.s32.totalorder %s93, %s94
      %p105 = scmp.eq.s32.totalorder %s31, 0
      %p106 = por %p104, %p105
      %p107 = scmp.ne.s32.totalorder %s93, %s94
      %p108 = scmp.eq.s32.totalorder %s32, 2
      %p109 = por %p107, %p108
      %p111 = scmp.ne.s32.totalorder %s94, %s110
      %p112 = scmp.eq.s32.totalorder %s32, 0
      %p113 = por %p111, %p112
      %s114 = sshra.s32 %s34, 7
      %s115 = sand.u32 %s34, 127
      %s116 = sadd.s32 %s114, %s33
      %s117 = smul.u32 %s116, 128
      %s118 = sshra.s32 %s34, 7
      %s119 = sand.u32 %s34, 127
      %s120 = sadd.s32 %s117, %s119
      %s121 = sld [smem:[#allocation5 + %s120]]
      %s122 = sshra.s32 %s41, 7
      %s123 = sand.u32 %s41, 127
      %s124 = sadd.s32 %s122, %s45
      %s125 = smul.u32 %s124, 128
      %s126 = sshra.s32 %s41, 7
      %s127 = sand.u32 %s41, 127
      %s128 = sadd.s32 %s125, %s127
      %s129 = sld [smem:[#allocation5 + %s128]]
      %s130 = ssub.s32 %s121, %s129
      %p131 = scmp.eq.s32.totalorder %s130, 0
      %s133 = sadd.s32 %s132, 1
      %s134 = scalar_select %p131, %s132, %s133
      %p137 = pneg %p131
      %p138 = scmp.eq.s32.totalorder %s26, 2
      %p139 = por %p137, %p138
      %p140 = scmp.ne.s32.totalorder %s132, %s135
      %p141 = scmp.eq.s32.totalorder %s26, 0
      %p142 = por %p140, %p141
      %p143 = scmp.ne.s32.totalorder %s132, %s135
      %p144 = scmp.eq.s32.totalorder %s31, 2
      %p145 = por %p143, %p144
      %p146 = scmp.ne.s32.totalorder %s135, %s136
      %p147 = scmp.eq.s32.totalorder %s31, 0
      %p148 = por %p146, %p147
      %p149 = scmp.ne.s32.totalorder %s135, %s136
      %p150 = scmp.eq.s32.totalorder %s32, 2
      %p151 = por %p149, %p150
      %p153 = scmp.ne.s32.totalorder %s136, %s152
      %p154 = scmp.eq.s32.totalorder %s32, 0
      %p155 = por %p153, %p154
      %s156 = sshra.s32 %s34, 7
      %s157 = sand.u32 %s34, 127
      %s158 = sadd.s32 %s156, %s33
      %s159 = smul.u32 %s158, 128
      %s160 = sshra.s32 %s34, 7
      %s161 = sand.u32 %s34, 127
      %s162 = sadd.s32 %s159, %s161
      %s163 = sld [smem:[#allocation5 + %s162]]
      %s164 = sshra.s32 %s41, 7
      %s165 = sand.u32 %s41, 127
      %s166 = sadd.s32 %s164, %s45
      %s167 = smul.u32 %s166, 128
      %s168 = sshra.s32 %s41, 7
      %s169 = sand.u32 %s41, 127
      %s170 = sadd.s32 %s167, %s169
      %s171 = sld [smem:[#allocation5 + %s170]]
      %s172 = ssub.s32 %s163, %s171
      %p173 = scmp.eq.s32.totalorder %s172, 0
      %s175 = sadd.s32 %s174, 1
      %s176 = scalar_select %p173, %s174, %s175
      %p179 = pneg %p173
      %p180 = scmp.eq.s32.totalorder %s26, 2
      %p181 = por %p179, %p180
      %p182 = scmp.ne.s32.totalorder %s174, %s177
      %p183 = scmp.eq.s32.totalorder %s26, 0
      %p184 = por %p182, %p183
      %p185 = scmp.ne.s32.totalorder %s174, %s177
      %p186 = scmp.eq.s32.totalorder %s31, 2
      %p187 = por %p185, %p186
      %p188 = scmp.ne.s32.totalorder %s177, %s178
      %p189 = scmp.eq.s32.totalorder %s31, 0
      %p190 = por %p188, %p189
      %p191 = scmp.ne.s32.totalorder %s177, %s178
      %p192 = scmp.eq.s32.totalorder %s32, 2
      %p193 = por %p191, %p192
      %p195 = scmp.ne.s32.totalorder %s178, %s194
      %p196 = scmp.eq.s32.totalorder %s32, 0
      %p197 = por %p195, %p196
      %s198 = ssub.s32 %s33, %s45
      %p199 = scmp.eq.s32.totalorder %s198, 0
      %s201 = sadd.s32 %s200, 1
      %s202 = scalar_select %p199, %s200, %s201
      %p205 = pneg %p199
      %p206 = scmp.eq.s32.totalorder %s26, 2
      %p207 = por %p205, %p206
      %p208 = scmp.ne.s32.totalorder %s200, %s203
      %p209 = scmp.eq.s32.totalorder %s26, 0
      %p210 = por %p208, %p209
      %p211 = scmp.ne.s32.totalorder %s200, %s203
      %p212 = scmp.eq.s32.totalorder %s31, 2
      %p213 = por %p211, %p212
      %p214 = scmp.ne.s32.totalorder %s203, %s204
      %p215 = scmp.eq.s32.totalorder %s31, 0
      %p216 = por %p214, %p215
      %p217 = scmp.ne.s32.totalorder %s203, %s204
      %p218 = scmp.eq.s32.totalorder %s32, 2
      %p219 = por %p217, %p218
      %p221 = scmp.ne.s32.totalorder %s204, %s220
      %p222 = scmp.eq.s32.totalorder %s32, 0
      %p223 = por %p221, %p222
      %p224 = scmp.le.s32.totalorder 1, %s26
      %p225 = scmp.lt.s32.totalorder %s26, 4
      %p226 = pnand %p224, %p225
      %p227 = pneg %p226
      // Predicated region
      $region9: #{_classification_heads.2} parent=5 // pred_check
        _
      $region10: #{_classification_heads.2} parent=5 // pred_check_branch
        %229 = sbr.rel (%p226) target = $region12
      $region11: #{_classification_heads.2} parent=5 // pred_region
        %s230 = ssub.s32 %s26, 1
      $region12: #{_classification_heads.2} parent=5 // pred_fallthru
        _
      %p231 = scmp.lt.s32.totalorder %s26, 3
      // Predicated region
      $region13: #{_classification_heads.2} parent=5 // pred_check
        %p232 = pneg %p231
      $region14: #{_classification_heads.2} parent=5 // pred_check_branch
        %234 = sbr.rel (%p232) target = $region16
      $region15: #{_classification_heads.2} parent=5 // pred_region
        // Predicated region
        $region17: #{_classification_heads.2} parent=15 // pred_check
          %p235 = pneg %p58
        $region18: #{_classification_heads.2} parent=15 // pred_check_branch
          %237 = sbr.rel (%p235) target = $region20
        $region19: #{_classification_heads.2} parent=15 // pred_region
          %p238 = scmp.lt.s32.totalorder %s33, 2
          %s239 = scalar_select %p238, %s33, 2
          %s240 = smul.addr %s239, 4
          %s241 = scalar_lea.vmem %s2, %s240
        $region20: #{_classification_heads.2} parent=15 // pred_fallthru
          _
        // Predicated region
        $region21: #{_classification_heads.2} parent=15 // pred_check
          %p242 = pneg %p100
        $region22: #{_classification_heads.2} parent=15 // pred_check_branch
          %244 = sbr.rel (%p242) target = $region24
        $region23: #{_classification_heads.2} parent=15 // pred_region
          %s245 = sand.u32 %s90, 1
          %s246 = scalar_lea.sflag [#allocation8], %s245
          %s247 = sand.u32 %s90, 1
          %s248 = smul.addr %s247, 16
          %s249 = scalar_lea.vmem [#allocation7], %s248
          %s250 = sshra.s32 %s34, 7
          %s251 = sand.u32 %s34, 127
          %s252 = sadd.s32 %s250, %s33
          %s253 = smul.u32 %s252, 128
          %s254 = sshra.s32 %s34, 7
          %s255 = sand.u32 %s34, 127
          %s256 = sadd.s32 %s253, %s255
          %s257 = sld [smem:[#allocation5 + %s256]]
          %s259 = ssub.s32 256, 256
          %260 = vsyncadd %s246, %s259
          %s261 = smul.addr %s257, 64
          %s262 = scalar_lea.hbm %s3, %s261
          %s263 = sshll.u32 %s249, 4
          %s264 = int_to_ptr.vmem [resolvable:$true] %s263
          %269 = dma.hbm_to_vmem [thread:$0]  %s262, 256, %s264, %s246, 192, 64, 4
        $region24: #{_classification_heads.2} parent=15 // pred_fallthru
          _
        // Predicated region
        $region25: #{_classification_heads.2} parent=15 // pred_check
          %p270 = pneg %p142
        $region26: #{_classification_heads.2} parent=15 // pred_check_branch
          %272 = sbr.rel (%p270) target = $region28
        $region27: #{_classification_heads.2} parent=15 // pred_region
          %s273 = sshra.s32 %s34, 7
          %s274 = sand.u32 %s34, 127
          %s275 = sadd.s32 %s273, %s33
          %s276 = smul.u32 %s275, 128
          %s277 = sshra.s32 %s34, 7
          %s278 = sand.u32 %s34, 127
          %s279 = sadd.s32 %s276, %s278
          %s280 = sld [smem:[#allocation5 + %s279]]
          %p281 = scmp.lt.s32.totalorder %s280, 2
          %s282 = scalar_select %p281, %s280, 2
          %s283 = scalar_lea.vmem %s4, %s282
          %s284 = sshra.s32 %s34, 7
          %s285 = sand.u32 %s34, 127
          %s286 = sadd.s32 %s284, %s33
          %s287 = smul.u32 %s286, 128
          %s288 = sshra.s32 %s34, 7
          %s289 = sand.u32 %s34, 127
          %s290 = sadd.s32 %s287, %s289
          %s291 = sld [smem:[#allocation5 + %s290]]
        $region28: #{_classification_heads.2} parent=15 // pred_fallthru
          _
      $region16: #{_classification_heads.2} parent=5 // pred_fallthru
        _
      %p292 = scmp.le.s32.totalorder 1, %s26
      %p293 = scmp.lt.s32.totalorder %s26, 4
      %p294 = pnand %p292, %p293
      %p295 = pneg %p294
      // Predicated region
      $region29: #{_classification_heads.2} parent=5 // pred_check
        _
      $region30: #{_classification_heads.2} parent=5 // pred_check_branch
        %297 = sbr.rel (%p294) target = $region32
      $region31: #{_classification_heads.2} parent=5 // pred_region
        %s298 = ssub.s32 %s26, 1
        %s299 = sand.u32 %s93, 1
        %s300 = scalar_lea.sflag [#allocation8], %s299
        %s301 = sand.u32 %s93, 1
        %s302 = smul.addr %s301, 16
        %s303 = scalar_lea.vmem [#allocation7], %s302
        // Predicated region
        $region33: #{_classification_heads.2} parent=31 // pred_check
          %p304 = pneg %p106
        $region34: #{_classification_heads.2} parent=31 // pred_check_branch
          %306 = sbr.rel (%p304) target = $region36
        $region35: #{_classification_heads.2} parent=31 // pred_region
          %307 = dma.done %s300, 256
        $region36: #{_classification_heads.2} parent=31 // pred_fallthru
          _
        %p308 = scmp.lt.s32.totalorder %s35, 2
        %s309 = scalar_select %p308, %s35, 2
        %s310 = smul.addr %s309, 4
        %s311 = scalar_lea.vmem %s2, %s310
        %p312 = pneg %p64
        %p313 = pneg %p61
        %s314 = sand.u32 %s93, 1
        %s315 = scalar_lea.sflag [#allocation8], %s314
        %s316 = sand.u32 %s93, 1
        %s317 = smul.addr %s316, 16
        %s318 = scalar_lea.vmem [#allocation7], %s317
        %p319 = pneg %p106
        %p320 = pneg %p103
        %s321 = sshra.s32 %s36, 7
        %s322 = sand.u32 %s36, 127
        %s323 = sadd.s32 %s321, %s35
        %s324 = smul.u32 %s323, 128
        %s325 = sshra.s32 %s36, 7
        %s326 = sand.u32 %s36, 127
        %s327 = sadd.s32 %s324, %s326
        %s328 = sld [smem:[#allocation5 + %s327]]
        %p329 = scmp.lt.s32.totalorder %s328, 2
        %s330 = scalar_select %p329, %s328, 2
        %s331 = scalar_lea.vmem %s4, %s330
        %p332 = pneg %p148
        %p333 = pneg %p145
        %p334 = pneg %p190
        %p335 = pneg %p187
        %s336 = sshra.s32 %s36, 7
        %s337 = sand.u32 %s36, 127
        %s338 = sadd.s32 %s336, %s35
        %s339 = smul.u32 %s338, 128
        %s340 = sshra.s32 %s36, 7
        %s341 = sand.u32 %s36, 127
        %s342 = sadd.s32 %s339, %s341
        %s343 = sld [smem:[#allocation5 + %s342]]
        %p344 = scmp.lt.s32.totalorder %s343, 2
        %s345 = scalar_select %p344, %s343, 2
        %s346 = smul.addr %s345, 8
        %s347 = scalar_lea.vmem %s5, %s346
        %p348 = pneg %p216
        %p349 = pneg %p213
        %p350 = scmp.lt.s32.totalorder %s35, 2
        %s351 = scalar_select %p350, %s35, 2
        %s352 = smul.addr %s351, 8
        %s353 = scalar_lea.vmem %s6, %s352
        %p354 = scmp.lt.s32.totalorder %s35, 2
        %s355 = scalar_select %p354, %s35, 2
        %s356 = smul.addr %s355, 4
        %s357 = scalar_lea.vmem %s2, %s356
        %s358 = sshra.s32 %s36, 7
        %s359 = sand.u32 %s36, 127
        %s360 = sadd.s32 %s358, %s35
        %s361 = smul.u32 %s360, 128
        %s362 = sshra.s32 %s36, 7
        %s363 = sand.u32 %s36, 127
        %s364 = sadd.s32 %s361, %s363
        %s365 = sld [smem:[#allocation5 + %s364]]
        %s366 = sshra.s32 %s36, 7
        %s367 = sand.u32 %s36, 127
        %s368 = sadd.s32 %s366, %s35
        %s369 = smul.u32 %s368, 128
        %s370 = sshra.s32 %s36, 7
        %s371 = sand.u32 %s36, 127
        %s372 = sadd.s32 %s369, %s371
        %s373 = sld [smem:[#allocation5 + %s372]]
        %p374 = scmp.lt.s32.totalorder %s373, 2
        %s375 = scalar_select %p374, %s373, 2
        %s376 = scalar_lea.vmem %s4, %s375
        %s377 = sshra.s32 %s36, 7
        %s378 = sand.u32 %s36, 127
        %s379 = sadd.s32 %s377, %s35
        %s380 = smul.u32 %s379, 128
        %s381 = sshra.s32 %s36, 7
        %s382 = sand.u32 %s36, 127
        %s383 = sadd.s32 %s380, %s382
        %s384 = sld [smem:[#allocation5 + %s383]]
        %s385 = sshra.s32 %s36, 7
        %s386 = sand.u32 %s36, 127
        %s387 = sadd.s32 %s385, %s35
        %s388 = smul.u32 %s387, 128
        %s389 = sshra.s32 %s36, 7
        %s390 = sand.u32 %s36, 127
        %s391 = sadd.s32 %s388, %s390
        %s392 = sld [smem:[#allocation5 + %s391]]
        %p393 = scmp.lt.s32.totalorder %s392, 2
        %s394 = scalar_select %p393, %s392, 2
        %s395 = smul.addr %s394, 8
        %s396 = scalar_lea.vmem %s5, %s395
        %s397 = sshra.s32 %s36, 7
        %s398 = sand.u32 %s36, 127
        %s399 = sadd.s32 %s397, %s35
        %s400 = smul.u32 %s399, 128
        %s401 = sshra.s32 %s36, 7
        %s402 = sand.u32 %s36, 127
        %s403 = sadd.s32 %s400, %s402
        %s404 = sld [smem:[#allocation5 + %s403]]
        %p405 = scmp.lt.s32.totalorder %s35, 2
        %s406 = scalar_select %p405, %s35, 2
        %s407 = smul.addr %s406, 8
        %s408 = scalar_lea.vmem %s6, %s407
        %s410 = sld [smem:[#allocation6 + %s35]]
        %p411 = scmp.eq.s32.totalorder %s36, 0
        // Predicated region
        $region37: #{_classification_heads.2} parent=31 // pred_check
          %p412 = pneg %p411
        $region38: #{_classification_heads.2} parent=31 // pred_check_branch
          %414 = sbr.rel (%p412) target = $region40
        $region39: #{_classification_heads.2} parent=31 // pred_region
          %vm415 = vcmask 7168
          %416 = vst.msk [vmem:[#allocation2] sm:$0xff] %vm415, -inf
          %417 = vst.msk [vmem:[#allocation3] sm:$0xff] %vm415, 0.0
        $region40: #{_classification_heads.2} parent=31 // pred_fallthru
          _
        %p418 = scmp.lt.s32.totalorder %s36, %s410
        // Predicated region
        $region41: #{_classification_heads.2} parent=31 // pred_check
          %p419 = pneg %p418
        $region42: #{_classification_heads.2} parent=31 // pred_check_branch
          %421 = sbr.rel (%p419) target = $region44
        $region43: #{_classification_heads.2} parent=31 // pred_region
          %v422 = vld [vmem:[%s357] sm:$0xf]
          %v423 = vld [vmem:[%s303] sm:$0xf]
          %v424 = vld [vmem:[%s303 + $0x4] sm:$0xf]
          %v425 = vld [vmem:[%s303 + $0x8] sm:$0xf]
          %v426 = vld [vmem:[%s303 + $0xc] sm:$0xf]
          %v427 = vld [vmem:[%s376] sm:$0x1]
          %v429 = vlaneseq
          %v430 = vshrl.u32 %v429, 7
          %v431 = vsub.s32 0, %v430
          %v432 = vrot.slane %v427, %v431
          %v438 = vunpack.c.l.b16 %v423
          %v439 = vunpack.c.l.b16 %v424
          %v440 = vunpack.c.l.b16 %v425
          %v441 = vunpack.c.l.b16 %v426
          %v442 = vpack.c.b16 %v439, %v438
          %v443 = vpack.c.b16 %v441, %v440
          %vm446 = vcmask 261120
          %v448 = vsel %vm446, %v422, 0
          %450 = vmatprep.subr.bf16.mxu0 0
          %451 = vmatpush1.bf16.msra.mxu0 0
          %452 = vmatprep.subr.bf16.mxu0 0
          %453 = vmatpush1.bf16.msra.mxu0 0
          %454 = vmatprep.subr.bf16.mxu0 0
          %455 = vmatpush1.bf16.msra.mxu0 0
          %456 = vmatprep.subr.bf16.mxu0 0
          %457 = vmatpush1.bf16.msra.mxu0 0
          %458 = vmatprep.subr.bf16.mxu0 0
          %459 = vmatpush1.bf16.msra.mxu0 0
          %460 = vmatprep.subr.bf16.mxu0 0
          %461 = vmatpush1.bf16.msra.mxu0 0
          %462 = vmatprep.subr.bf16.mxu0 0
          %463 = vmatpush1.bf16.msra.mxu0 %v443
          %464 = vmatprep.subr.bf16.mxu0 0
          %465 = vmatpush1.bf16.msra.mxu0 %v442
          %466 = vmatprep.subr.bf16.mxu0 0
          %467 = vmatpush2.bf16.msra.mxu0 0
          %468 = vmatprep.subr.bf16.mxu0 0
          %469 = vmatpush2.bf16.msra.mxu0 0
          %470 = vmatprep.subr.bf16.mxu0 0
          %471 = vmatpush2.bf16.msra.mxu0 0
          %472 = vmatprep.subr.bf16.mxu0 0
          %473 = vmatpush2.bf16.msra.mxu0 0
          %474 = vmatprep.subr.bf16.mxu0 0
          %475 = vmatpush2.bf16.msra.mxu0 0
          %476 = vmatprep.subr.bf16.mxu0 0
          %477 = vmatpush2.bf16.msra.mxu0 0
          %478 = vmatprep.subr.bf16.mxu0 0
          %479 = vmatpush2.bf16.msra.mxu0 0
          %480 = vmatprep.subr.bf16.mxu0 0
          %481 = vmatpush2.bf16.msra.mxu0 0
          %482 = vmatprep.mubr.bf16.mxu0 0
          %483 = vmatmul.mubr.bf16.gmra.mxu0 %v448
          %v484 = vpop.f32.mrf.mxu0
          %v485 = vadd.f32 %v432, %v484
          %v486 = vpop.f32.mrf.mxu0
          %v487 = vpop.f32.mrf.mxu0
          %v488 = vpop.f32.mrf.mxu0
          %489 = vdwg.mxu0
          %490 = vst [vmem:[%s396] sm:$0xff] %v485
          %v491 = vld [vmem:[#allocation2] sm:$0xff]
          %492 = vmax.xlane.f32.xlu0 %v485
          %v493 = vpop.xlane.xlu0 %492
          %v494 = vmax.f32 %v491, %v493
          %v495 = vld [vmem:[#allocation3] sm:$0xff]
          %v496 = vsub.f32 %v491, %v494
          %v497 = vmul.f32 %v496, 1.442695
          %v498 = vpow.pop %v497
          %v499 = vmul.f32 %v495, %v498
          %501 = vset.pattern.permute.xlu0 0
          %502 = vperm.xlu0 %501, %v494
          %v503 = vpop.permute.xlu0 %502
          %v505 = vsub.f32 %v485, %v503
          %v506 = vmul.f32 %v505, 1.442695
          %v507 = vpow.pop %v506
          %508 = vadd.xlane.f32.xlu0 %v507
          %v509 = vpop.xlane.xlu0 %508
          %v510 = vadd.f32 %v499, %v509
          %vm511 = vcmask 7168
          %512 = vst.msk [vmem:[#allocation3] sm:$0xff] %vm511, %v510
          %513 = vst.msk [vmem:[#allocation2] sm:$0xff] %vm511, %v494
        $region44: #{_classification_heads.2} parent=31 // pred_fallthru
          _
        // Predicated region
        $region45: #{_classification_heads.2} parent=31 // pred_check
          %p514 = pneg %p411
        $region46: #{_classification_heads.2} parent=31 // pred_check_branch
          %516 = sbr.rel (%p514) target = $region48
        $region47: #{_classification_heads.2} parent=31 // pred_region
          %v517 = vld [vmem:[#allocation2] sm:$0xff]
          %v518 = vld [vmem:[#allocation3] sm:$0xff]
          %v519 = vlog2.pop %v518
          %v520 = vmul.f32 %v519, 0.6931472
          %v521 = vadd.f32 %v517, %v520
          %523 = vset.pattern.permute.xlu0 0
          %524 = vperm.xlu0 %523, %v521
          %v525 = vpop.permute.xlu0 %524
          %527 = vst [vmem:[%s408] sm:$0xff] %v525
        $region48: #{_classification_heads.2} parent=31 // pred_fallthru
          _
        %s528 = sshra.s32 %s36, 7
        %s529 = sand.u32 %s36, 127
        %s530 = sadd.s32 %s528, %s35
        %s531 = smul.u32 %s530, 128
        %s532 = sshra.s32 %s36, 7
        %s533 = sand.u32 %s36, 127
        %s534 = sadd.s32 %s531, %s533
        %s535 = sld [smem:[#allocation5 + %s534]]
        %p536 = scmp.lt.s32.totalorder %s535, 2
        %s537 = scalar_select %p536, %s535, 2
        %s538 = smul.addr %s537, 8
        %s539 = scalar_lea.vmem %s5, %s538
        %p540 = scmp.lt.s32.totalorder %s35, 2
        %s541 = scalar_select %p540, %s35, 2
        %s542 = smul.addr %s541, 8
        %s543 = scalar_lea.vmem %s6, %s542
        // Predicated region
        $region49: #{_classification_heads.2} parent=31 // pred_check
          %p544 = pneg %p187
        $region50: #{_classification_heads.2} parent=31 // pred_check_branch
          %546 = sbr.rel (%p544) target = $region52
        $region51: #{_classification_heads.2} parent=31 // pred_region
          %s547 = sshra.s32 %s36, 7
          %s548 = sand.u32 %s36, 127
          %s549 = sadd.s32 %s547, %s35
          %s550 = smul.u32 %s549, 128
          %s551 = sshra.s32 %s36, 7
          %s552 = sand.u32 %s36, 127
          %s553 = sadd.s32 %s550, %s552
          %s554 = sld [smem:[#allocation5 + %s553]]
        $region52: #{_classification_heads.2} parent=31 // pred_fallthru
          _
        // Predicated region
        $region53: #{_classification_heads.2} parent=31 // pred_check
          %p555 = pneg %p213
        $region54: #{_classification_heads.2} parent=31 // pred_check_branch
          %557 = sbr.rel (%p555) target = $region56
        $region55: #{_classification_heads.2} parent=31 // pred_region
          _
        $region56: #{_classification_heads.2} parent=31 // pred_fallthru
          _
      $region32: #{_classification_heads.2} parent=5 // pred_fallthru
        _
      %p558 = scmp.le.s32.totalorder 2, %s26
      // Predicated region
      $region57: #{_classification_heads.2} parent=5 // pred_check
        %p559 = pneg %p558
      $region58: #{_classification_heads.2} parent=5 // pred_check_branch
        %561 = sbr.rel (%p559) target = $region60
      $region59: #{_classification_heads.2} parent=5 // pred_region
        %s562 = ssub.s32 %s26, 2
        // Predicated region
        $region61: #{_classification_heads.2} parent=59 // pred_check
          %p563 = pneg %p193
        $region62: #{_classification_heads.2} parent=59 // pred_check_branch
          %565 = sbr.rel (%p563) target = $region64
        $region63: #{_classification_heads.2} parent=59 // pred_region
          %s566 = sshra.s32 %s38, 7
          %s567 = sand.u32 %s38, 127
          %s568 = sadd.s32 %s566, %s37
          %s569 = smul.u32 %s568, 128
          %s570 = sshra.s32 %s38, 7
          %s571 = sand.u32 %s38, 127
          %s572 = sadd.s32 %s569, %s571
          %s573 = sld [smem:[#allocation5 + %s572]]
          %p574 = scmp.lt.s32.totalorder %s573, 2
          %s575 = scalar_select %p574, %s573, 2
          %s576 = smul.addr %s575, 8
          %s577 = scalar_lea.vmem %s5, %s576
        $region64: #{_classification_heads.2} parent=59 // pred_fallthru
          _
        // Predicated region
        $region65: #{_classification_heads.2} parent=59 // pred_check
          %p578 = pneg %p219
        $region66: #{_classification_heads.2} parent=59 // pred_check_branch
          %580 = sbr.rel (%p578) target = $region68
        $region67: #{_classification_heads.2} parent=59 // pred_region
          %p581 = scmp.lt.s32.totalorder %s37, 2
          %s582 = scalar_select %p581, %s37, 2
          %s583 = smul.addr %s582, 8
          %s584 = scalar_lea.vmem %s6, %s583
        $region68: #{_classification_heads.2} parent=59 // pred_fallthru
          _
      $region60: #{_classification_heads.2} parent=5 // pred_fallthru
        _
    $region6: #{_classification_heads.2} parent=1 // loop_footer
      %s30 = sadd.s32 1, %s26
    $region7: #{_classification_heads.2} parent=1 // loop_footer_branch
      %25 = sbr.rel target = $region3
    $region8: #{_classification_heads.2} parent=1 // loop_exit
      _
    %585 = vsyncpa [#allocation8], 1
    %s586 = scalar_lea.sflag [#allocation8], 1
    %587 = vsyncpa %s586, 1

</llo_original>
